<compile_context>
chip_gen: v7x
topology: tpu7x:2x2x1
jax: 0.10.0
libtpu: 0.0.40
codegen_flags: <defaults>
</compile_context>

<pallas_src>
import functools
import math

import jax
import jax.numpy as jnp
from jax.experimental import pallas as pl
from jax.experimental.pallas import tpu as pltpu


def _lcm(a, b):
    return a * b // math.gcd(a, b)


# ---------------------------------------------------------------------------
# Kernel
# ---------------------------------------------------------------------------
def wffn_naf_kernel(x_ref, w1_ref, b1_ref, w2_ref, b2_ref, o_ref, *, width, hidden):
    """One (batch, spatial-tile) grid step.

    Layout: flattened spatial index n = h*W + w of the NCHW input sits on the
    lane dim; channels sit on sublanes.  Every tile holds whole row-pairs, so
    the 2x2 wavelet stencil never crosses a tile boundary.

    x_ref : (1, C, T)        input slab, natural NCHW order
    w1_ref: (4*hidden, C)    project_in.T pre-scaled by the 4 relative-parity
                             wavelet coefficients [same | col | row | diag]
    b1_ref: (hidden, 1)      wavelet-folded project_in bias (= w_LL * b_in)
    w2_ref: (C, hidden//2)   project_out.T
    b2_ref: (C, 1)           project_out bias
    o_ref : (1, C, T)        output slab, natural NCHW order
    """
    x = x_ref[0]                                    # (C, T)
    T = x.shape[-1]
    h = hidden

    # project_in for all four parity-offset coefficient sets in one MXU call.
    zs = jnp.dot(w1_ref[...], x, preferred_element_type=jnp.float32)   # (4h, T) f32
    z_same, z_col, z_row, z_diag = zs[:h], zs[h:2 * h], zs[2 * h:3 * h], zs[3 * h:]

    # Parity of the flattened spatial index, via float arithmetic only (no
    # vector integer div/rem).  W is even, so column parity == n % 2.
    pos = jax.lax.broadcasted_iota(jnp.int32, (1, T), 1).astype(jnp.float32)
    colpar = pos - 2.0 * jnp.floor(pos * 0.5)                 # 0 even col, 1 odd col
    rowidx = jnp.floor((pos + 0.5) * (1.0 / width))           # n // W  (exact)
    rowpar = rowidx - 2.0 * jnp.floor(rowidx * 0.5)           # 0 even row, 1 odd row
    col_even = jnp.broadcast_to(colpar, (h, T)) < 0.5
    row_even = jnp.broadcast_to(rowpar, (h, T)) < 0.5

    # Neighbour gathers inside each 2x2 block as XLU rotations.  Wrapped lanes
    # are never selected because every tile holds whole row-pairs.
    def row_partner(v):      # value at the other row of the pixel's 2x2 block
        return jnp.where(row_even,
                         pltpu.roll(v, T - width, 1),         # v[n + W]
                         pltpu.roll(v, width, 1))             # v[n - W]

    def col_partner(v):      # value at the other column of the 2x2 block
        return jnp.where(col_even,
                         pltpu.roll(v, T - 1, 1),             # v[n + 1]
                         pltpu.roll(v, 1, 1))                 # v[n - 1]

    # DWT -> per-channel wavelet scale -> IWT == 4-tap relative-parity stencil.
    s = z_same + row_partner(z_row) + col_partner(z_col + row_partner(z_diag))
    s = s + b1_ref[...]

    # SimpleGate + project_out.
    g = s[:h // 2] * s[h // 2:]
    o = jnp.dot(w2_ref[...], g, preferred_element_type=jnp.float32) + b2_ref[...]
    o_ref[0] = o.astype(o_ref.dtype)


# ---------------------------------------------------------------------------
# Wrapper
# ---------------------------------------------------------------------------
def wffn_naf_forward(y, w_in, b_in, w_wav4, w_out, b_out, tile_lanes=8192):
    """WFFN_NAF forward.  y: NCHW [B, dim, H, W] (float32 or bfloat16).

    w_in  : (dim, hidden)     project_in 1x1-conv weight, (in, out)
    b_in  : (1, hidden)
    w_wav4: (4, hidden)       wavelet_weight, band order [LL, HL, LH, HH]
    w_out : (hidden//2, dim)  project_out 1x1-conv weight, (in, out)
    b_out : (1, dim)
    """
    B, C, H, W = y.shape
    dim, hidden = w_in.shape
    assert C == dim and H % 2 == 0 and W % 2 == 0 and hidden % 2 == 0
    half = hidden // 2
    HW = H * W

    # ---- fold DWT -> wavelet scale -> IWT into 4 per-channel coefficients.
    # The composite 4x4 parity map depends only on (rp^rq, cp^cq); both 1/2
    # factors of dwt_init/iwt_init are absorbed into the 0.25.
    wLL, wHL, wLH, wHH = (w_wav4[i].astype(jnp.float32) for i in range(4))
    a_same = 0.25 * (wLL + wHL + wLH + wHH)
    a_col = 0.25 * (wLL - wHL + wLH - wHH)
    a_row = 0.25 * (wLL + wHL - wLH - wHH)
    a_diag = 0.25 * (wLL - wHL - wLH + wHH)

    wt = w_in.astype(jnp.float32).T                      # (hidden, C)
    bt = b_in.astype(jnp.float32).reshape(hidden)
    w1 = jnp.concatenate([a_same[:, None] * wt, a_col[:, None] * wt,
                          a_row[:, None] * wt, a_diag[:, None] * wt], axis=0)
    b1 = (wLL * bt)[:, None]                             # constant field -> w_LL * b_in
    w2 = w_out.astype(jnp.float32).T                     # (dim, half)
    b2 = b_out.astype(jnp.float32).reshape(dim, 1)
    # Activation I/O and the first matmul run in y's dtype (bf16 halves the
    # dominant HBM streams); everything downstream stays f32.
    w1 = w1.astype(y.dtype)

    # ---- natural-layout view: (B, C, H*W), spatial flattened onto lanes.
    x = y.reshape(B, C, HW)                              # free, contiguous reshape
    step = _lcm(2 * W, 128)                              # row-pair & lane-tile aligned
    if HW % 128 != 0:
        # Rare fallback for awkward spatial sizes: pad whole row-pairs of zeros
        # so lane tiles stay 128-aligned.
        # TODO(synk): a row-pair-granular index_map could avoid this pad copy.
        HWp = -(-HW // step) * step
        x = jnp.pad(x, ((0, 0), (0, 0), (0, HWp - HW)))
    else:
        HWp = HW

    # ---- tile selection: big lane tiles, whole row-pairs, VMEM-budgeted.
    if HWp < step:
        tile = HWp
    else:
        cap = min(int(tile_lanes), HWp)
        if B == 1:
            cap = min(cap, -(-HWp // 2))                 # >=2 blocks -> both v7x TCs busy
        tile = max(step, (cap // step) * step)

    dsize = jnp.dtype(y.dtype).itemsize

    def _vmem_est(t):
        return (2 * 2 * C * t * dsize                    # in + out blocks, double-buffered
                + 14 * hidden * t * 4)                   # f32 intermediates / temporaries

    budget = 22 * 1024 * 1024                            # safe on v7x (64 MiB per TC)
    while _vmem_est(tile) > budget and tile > step:
        tile = max(step, (tile // 2 // step) * step)
    n_t = pl.cdiv(HWp, tile)                             # ragged last block is fine
    vmem_limit = int(min(60 * 1024 * 1024,
                         max(34 * 1024 * 1024, 2 * _vmem_est(tile))))

    kern = functools.partial(wffn_naf_kernel, width=W, hidden=hidden)
    out = pl.pallas_call(
        kern,
        out_shape=jax.ShapeDtypeStruct((B, C, HWp), y.dtype),
        grid=(B, n_t),
        in_specs=[
            pl.BlockSpec((1, C, tile), lambda b, i: (b, 0, i)),
            pl.BlockSpec((4 * hidden, C), lambda b, i: (0, 0)),
            pl.BlockSpec((hidden, 1), lambda b, i: (0, 0)),
            pl.BlockSpec((C, half), lambda b, i: (0, 0)),
            pl.BlockSpec((C, 1), lambda b, i: (0, 0)),
        ],
        out_specs=pl.BlockSpec((1, C, tile), lambda b, i: (b, 0, i)),
        compiler_params=pltpu.CompilerParams(
            dimension_semantics=("parallel", "parallel"),
            vmem_limit_bytes=vmem_limit,
        ),
    )(x, w1, b1, w2, b2)

    if HWp != HW:
        out = out[:, :, :HW]
    return out.reshape(B, C, H, W)


# ---------------------------------------------------------------------------
# Pure-JAX mirror of the PyTorch forward (NCHW), for verification.
# ---------------------------------------------------------------------------
def ref_forward(y, w_in, b_in, w_wav4, w_out, b_out):
    hidden = w_in.shape[1]
    x = jnp.einsum("bihw,io->bohw", y, w_in) + b_in[0][None, :, None, None]
    x1 = x[:, :, 0::2, 0::2] / 2
    x2 = x[:, :, 1::2, 0::2] / 2
    x3 = x[:, :, 0::2, 1::2] / 2
    x4 = x[:, :, 1::2, 1::2] / 2
    LL = x1 + x2 + x3 + x4
    HL = -x1 - x2 + x3 + x4
    LH = -x1 + x2 - x3 + x4
    HH = x1 - x2 - x3 + x4
    dwt = jnp.concatenate([LL, HL, LH, HH], axis=1) * w_wav4.reshape(1, -1, 1, 1)
    a1 = dwt[:, 0 * hidden:1 * hidden] / 2
    a2 = dwt[:, 1 * hidden:2 * hidden] / 2
    a3 = dwt[:, 2 * hidden:3 * hidden] / 2
    a4 = dwt[:, 3 * hidden:4 * hidden] / 2
    B, _, H2, W2 = a1.shape
    h = jnp.zeros((B, hidden, 2 * H2, 2 * W2), jnp.float32)
    h = h.at[:, :, 0::2, 0::2].set(a1 - a2 - a3 + a4)
    h = h.at[:, :, 1::2, 0::2].set(a1 - a2 + a3 - a4)
    h = h.at[:, :, 0::2, 1::2].set(a1 + a2 - a3 - a4)
    h = h.at[:, :, 1::2, 1::2].set(a1 + a2 + a3 + a4)
    g = h[:, :hidden // 2] * h[:, hidden // 2:]
    return jnp.einsum("bihw,io->bohw", g, w_out) + b_out[0][None, :, None, None]


if __name__ == "__main__":
    # Module config (synthetic, deterministic init - no checkpoint loading).
    dim = 8
    ffn_expansion_factor = 4
    hidden = int(dim * ffn_expansion_factor)   # 32

    key = jax.random.PRNGKey(0)
    k_y, k_wi, k_bi, k_ww, k_wo, k_bo, k_y2, k_y3 = jax.random.split(key, 8)

    # project_in: Conv2d(dim, hidden, 1) stored as (in, out) matmul weight.
    w_in = jax.random.normal(k_wi, (dim, hidden), jnp.float32) * 0.3
    b_in = jax.random.normal(k_bi, (1, hidden), jnp.float32) * 0.1
    # wavelet_weight: Parameter (hidden*4, 1, 1) kept as (4, hidden), band
    # order [LL, HL, LH, HH] (module inits to ones; random values exercise it).
    w_wav4 = jax.random.normal(k_ww, (4, hidden), jnp.float32) * 0.5 + 1.0
    # project_out: Conv2d(hidden//2, dim, 1) -> (in, out).
    w_out = jax.random.normal(k_wo, (hidden // 2, dim), jnp.float32) * 0.3
    b_out = jax.random.normal(k_bo, (1, dim), jnp.float32) * 0.1
    # gamma (1, dim, 1, 1) is declared in __init__ but unused in forward;
    # dropout2 has drop_out_rate=0.0 -> Identity.

    fwd = jax.jit(wffn_naf_forward, static_argnames=("tile_lanes",))

    # Test 1: f32, H*W a multiple of 128 (fast path, single spatial block / batch).
    B, H, W = 2, 16, 16
    y = jax.random.normal(k_y, (B, dim, H, W), jnp.float32)
    out = jax.block_until_ready(fwd(y, w_in, b_in, w_wav4, w_out, b_out))
    ref = ref_forward(y, w_in, b_in, w_wav4, w_out, b_out)
    err1 = float(jnp.max(jnp.abs(out - ref)))
    assert out.shape == (B, dim, H, W)
    assert err1 < 1e-3, f"mismatch vs reference (test 1): {err1}"

    # Test 2: f32, H*W (=400) not a multiple of 128 -> zero row-pair pad fallback.
    B2, Hb, Wb = 2, 20, 20
    y2 = jax.random.normal(k_y2, (B2, dim, Hb, Wb), jnp.float32)
    out2 = jax.block_until_ready(fwd(y2, w_in, b_in, w_wav4, w_out, b_out))
    ref2 = ref_forward(y2, w_in, b_in, w_wav4, w_out, b_out)
    err2 = float(jnp.max(jnp.abs(out2 - ref2)))
    assert out2.shape == (B2, dim, Hb, Wb)
    assert err2 < 1e-3, f"mismatch vs reference (test 2): {err2}"

    # Test 3: bf16 activations, batch=1, several spatial tiles with a ragged
    # final block (masked tail writes; spatial split keeps both v7x TCs busy).
    B3, Hc, Wc = 1, 16, 128
    y3 = jax.random.normal(k_y3, (B3, dim, Hc, Wc), jnp.float32).astype(jnp.bfloat16)
    out3 = jax.block_until_ready(
        fwd(y3, w_in, b_in, w_wav4, w_out, b_out, tile_lanes=768))
    ref3 = ref_forward(y3.astype(jnp.float32), w_in, b_in, w_wav4, w_out, b_out)
    err3 = float(jnp.max(jnp.abs(out3.astype(jnp.float32) - ref3)))
    assert out3.shape == (B3, dim, Hc, Wc) and out3.dtype == jnp.bfloat16
    assert err3 < 1.5e-1, f"mismatch vs reference (test 3, bf16): {err3}"

    print("KERNEL_OK")
</pallas_src>

<mosaic_0001>
module attributes {stable_mosaic.version = 11 : i64} {
  func.func @wffn_naf_kernel(%arg0: i32, %arg1: i32, %arg2: memref<1x8x256xf32, #tpu.memory_space<vmem>>, %arg3: memref<128x8xf32, #tpu.memory_space<vmem>>, %arg4: memref<32x1xf32, #tpu.memory_space<vmem>>, %arg5: memref<8x16xf32, #tpu.memory_space<vmem>>, %arg6: memref<8x1xf32, #tpu.memory_space<vmem>>, %arg7: memref<1x8x256xf32, #tpu.memory_space<vmem>>) attributes {dimension_semantics = [#tpu.dimension_semantics<parallel>, #tpu.dimension_semantics<parallel>], iteration_bounds = array<i64: 2, 1>, scalar_prefetch = 0 : i64, scratch_operands = 0 : i64, tpu.core_type = #tpu.core_type<tc>, window_params = [{transform_indices = @transform_0, window_bounds = array<i64: 1, 8, 256>}, {pipeline_mode = #tpu.pipeline_mode<synchronous>, transform_indices = @transform_1, window_bounds = array<i64: 128, 8>}, {pipeline_mode = #tpu.pipeline_mode<synchronous>, transform_indices = @transform_2, window_bounds = array<i64: 32, 1>}, {pipeline_mode = #tpu.pipeline_mode<synchronous>, transform_indices = @transform_3, window_bounds = array<i64: 8, 16>}, {pipeline_mode = #tpu.pipeline_mode<synchronous>, transform_indices = @transform_4, window_bounds = array<i64: 8, 1>}, {transform_indices = @transform_5, window_bounds = array<i64: 1, 8, 256>}]} {
    %c0 = arith.constant 0 : index
    %c0_0 = arith.constant 0 : index
    %c0_1 = arith.constant 0 : index
    %0 = vector.load %arg2[%c0, %c0_0, %c0_1] : memref<1x8x256xf32, #tpu.memory_space<vmem>>, vector<1x8x256xf32>
    %1 = vector.shape_cast %0 : vector<1x8x256xf32> to vector<8x256xf32>
    %c0_2 = arith.constant 0 : index
    %c0_3 = arith.constant 0 : index
    %2 = vector.load %arg3[%c0_2, %c0_3] : memref<128x8xf32, #tpu.memory_space<vmem>>, vector<128x8xf32>
    %cst = arith.constant dense<0.000000e+00> : vector<128x256xf32>
    %3 = tpu.matmul %2, %1, %cst {dimension_numbers = #tpu.dot_dimension_numbers<[1], [0], [0], [1], [0, 0, 1, 1], [], []>} : vector<128x8xf32>, vector<8x256xf32>, vector<128x256xf32> -> vector<128x256xf32>
    %4 = vector.extract_strided_slice %3 {offsets = [0, 0], sizes = [32, 256], strides = [1, 1]} : vector<128x256xf32> to vector<32x256xf32>
    %5 = vector.extract_strided_slice %3 {offsets = [32, 0], sizes = [32, 256], strides = [1, 1]} : vector<128x256xf32> to vector<32x256xf32>
    %6 = vector.extract_strided_slice %3 {offsets = [64, 0], sizes = [32, 256], strides = [1, 1]} : vector<128x256xf32> to vector<32x256xf32>
    %7 = vector.extract_strided_slice %3 {offsets = [96, 0], sizes = [32, 256], strides = [1, 1]} : vector<128x256xf32> to vector<32x256xf32>
    %8 = tpu.iota {dimensions = array<i32: 1>} : vector<1x256xi32>
    %9 = arith.sitofp %8 : vector<1x256xi32> to vector<1x256xf32>
    %cst_4 = arith.constant 5.000000e-01 : f32
    %10 = vector.broadcast %cst_4 : f32 to vector<1x256xf32>
    %11 = arith.mulf %9, %10 : vector<1x256xf32>
    %12 = math.floor %11 : vector<1x256xf32>
    %cst_5 = arith.constant 2.000000e+00 : f32
    %13 = vector.broadcast %cst_5 : f32 to vector<1x256xf32>
    %14 = arith.mulf %13, %12 : vector<1x256xf32>
    %15 = arith.subf %9, %14 : vector<1x256xf32>
    %cst_6 = arith.constant 5.000000e-01 : f32
    %16 = vector.broadcast %cst_6 : f32 to vector<1x256xf32>
    %17 = arith.addf %9, %16 : vector<1x256xf32>
    %cst_7 = arith.constant 6.250000e-02 : f32
    %18 = vector.broadcast %cst_7 : f32 to vector<1x256xf32>
    %19 = arith.mulf %17, %18 : vector<1x256xf32>
    %20 = math.floor %19 : vector<1x256xf32>
    %cst_8 = arith.constant 5.000000e-01 : f32
    %21 = vector.broadcast %cst_8 : f32 to vector<1x256xf32>
    %22 = arith.mulf %20, %21 : vector<1x256xf32>
    %23 = math.floor %22 : vector<1x256xf32>
    %cst_9 = arith.constant 2.000000e+00 : f32
    %24 = vector.broadcast %cst_9 : f32 to vector<1x256xf32>
    %25 = arith.mulf %24, %23 : vector<1x256xf32>
    %26 = arith.subf %20, %25 : vector<1x256xf32>
    %27 = vector.shape_cast %15 : vector<1x256xf32> to vector<1x256xf32>
    %28 = vector.broadcast %27 : vector<1x256xf32> to vector<32x256xf32>
    %cst_10 = arith.constant 5.000000e-01 : f32
    %29 = vector.broadcast %cst_10 : f32 to vector<32x256xf32>
    %30 = arith.cmpf olt, %28, %29 : vector<32x256xf32>
    %31 = vector.shape_cast %26 : vector<1x256xf32> to vector<1x256xf32>
    %32 = vector.broadcast %31 : vector<1x256xf32> to vector<32x256xf32>
    %cst_11 = arith.constant 5.000000e-01 : f32
    %33 = vector.broadcast %cst_11 : f32 to vector<32x256xf32>
    %34 = arith.cmpf olt, %32, %33 : vector<32x256xf32>
    %c240_i32 = arith.constant 240 : i32
    %35 = tpu.dynamic_rotate %6 by %c240_i32 dim 1 : vector<32x256xf32>, i32 -> vector<32x256xf32>
    %c16_i32 = arith.constant 16 : i32
    %36 = tpu.dynamic_rotate %6 by %c16_i32 dim 1 : vector<32x256xf32>, i32 -> vector<32x256xf32>
    %37 = arith.select %34, %35, %36 : vector<32x256xi1>, vector<32x256xf32>
    %38 = arith.addf %4, %37 : vector<32x256xf32>
    %c240_i32_12 = arith.constant 240 : i32
    %39 = tpu.dynamic_rotate %7 by %c240_i32_12 dim 1 : vector<32x256xf32>, i32 -> vector<32x256xf32>
    %c16_i32_13 = arith.constant 16 : i32
    %40 = tpu.dynamic_rotate %7 by %c16_i32_13 dim 1 : vector<32x256xf32>, i32 -> vector<32x256xf32>
    %41 = arith.select %34, %39, %40 : vector<32x256xi1>, vector<32x256xf32>
    %42 = arith.addf %5, %41 : vector<32x256xf32>
    %c255_i32 = arith.constant 255 : i32
    %43 = tpu.dynamic_rotate %42 by %c255_i32 dim 1 : vector<32x256xf32>, i32 -> vector<32x256xf32>
    %c1_i32 = arith.constant 1 : i32
    %44 = tpu.dynamic_rotate %42 by %c1_i32 dim 1 : vector<32x256xf32>, i32 -> vector<32x256xf32>
    %45 = arith.select %30, %43, %44 : vector<32x256xi1>, vector<32x256xf32>
    %46 = arith.addf %38, %45 : vector<32x256xf32>
    %c0_14 = arith.constant 0 : index
    %c0_15 = arith.constant 0 : index
    %47 = vector.load %arg4[%c0_14, %c0_15] : memref<32x1xf32, #tpu.memory_space<vmem>>, vector<32x1xf32>
    %48 = vector.broadcast %47 : vector<32x1xf32> to vector<32x256xf32>
    %49 = arith.addf %46, %48 : vector<32x256xf32>
    %50 = vector.extract_strided_slice %49 {offsets = [0, 0], sizes = [16, 256], strides = [1, 1]} : vector<32x256xf32> to vector<16x256xf32>
    %51 = vector.extract_strided_slice %49 {offsets = [16, 0], sizes = [16, 256], strides = [1, 1]} : vector<32x256xf32> to vector<16x256xf32>
    %52 = arith.mulf %50, %51 : vector<16x256xf32>
    %c0_16 = arith.constant 0 : index
    %c0_17 = arith.constant 0 : index
    %53 = vector.load %arg5[%c0_16, %c0_17] : memref<8x16xf32, #tpu.memory_space<vmem>>, vector<8x16xf32>
    %cst_18 = arith.constant dense<0.000000e+00> : vector<8x256xf32>
    %54 = tpu.matmul %53, %52, %cst_18 {dimension_numbers = #tpu.dot_dimension_numbers<[1], [0], [0], [1], [0, 0, 1, 1], [], []>} : vector<8x16xf32>, vector<16x256xf32>, vector<8x256xf32> -> vector<8x256xf32>
    %c0_19 = arith.constant 0 : index
    %c0_20 = arith.constant 0 : index
    %55 = vector.load %arg6[%c0_19, %c0_20] : memref<8x1xf32, #tpu.memory_space<vmem>>, vector<8x1xf32>
    %56 = vector.broadcast %55 : vector<8x1xf32> to vector<8x256xf32>
    %57 = arith.addf %54, %56 : vector<8x256xf32>
    %c0_21 = arith.constant 0 : index
    %c0_22 = arith.constant 0 : index
    %c0_23 = arith.constant 0 : index
    %58 = vector.load %arg7[%c0_21, %c0_22, %c0_23] : memref<1x8x256xf32, #tpu.memory_space<vmem>>, vector<1x8x256xf32>
    %59 = vector.shape_cast %58 : vector<1x8x256xf32> to vector<8x256xf32>
    %60 = vector.shape_cast %57 : vector<8x256xf32> to vector<1x8x256xf32>
    tpu.vector_store %arg7[%c0_21, %c0_22, %c0_23], %60 {strides = array<i32>} : memref<1x8x256xf32, #tpu.memory_space<vmem>>, vector<1x8x256xf32>,
    return
  }
  func.func @transform_0(%arg0: i32, %arg1: i32) -> (i32, i32, i32) {
    %c0_i32 = arith.constant 0 : i32
    %c0_i32_0 = arith.constant 0 : i32
    return %arg0, %c0_i32, %arg1 : i32, i32, i32
  }
  func.func @transform_1(%arg0: i32, %arg1: i32) -> (i32, i32) {
    %c0_i32 = arith.constant 0 : i32
    %c0_i32_0 = arith.constant 0 : i32
    %c0_i32_1 = arith.constant 0 : i32
    return %c0_i32, %c0_i32_0 : i32, i32
  }
  func.func @transform_2(%arg0: i32, %arg1: i32) -> (i32, i32) {
    %c0_i32 = arith.constant 0 : i32
    %c0_i32_0 = arith.constant 0 : i32
    %c0_i32_1 = arith.constant 0 : i32
    return %c0_i32, %c0_i32_0 : i32, i32
  }
  func.func @transform_3(%arg0: i32, %arg1: i32) -> (i32, i32) {
    %c0_i32 = arith.constant 0 : i32
    %c0_i32_0 = arith.constant 0 : i32
    %c0_i32_1 = arith.constant 0 : i32
    return %c0_i32, %c0_i32_0 : i32, i32
  }
  func.func @transform_4(%arg0: i32, %arg1: i32) -> (i32, i32) {
    %c0_i32 = arith.constant 0 : i32
    %c0_i32_0 = arith.constant 0 : i32
    %c0_i32_1 = arith.constant 0 : i32
    return %c0_i32, %c0_i32_0 : i32, i32
  }
  func.func @transform_5(%arg0: i32, %arg1: i32) -> (i32, i32, i32) {
    %c0_i32 = arith.constant 0 : i32
    %c0_i32_0 = arith.constant 0 : i32
    return %arg0, %c0_i32, %arg1 : i32, i32, i32
  }
}

</mosaic_0001>

<llo_original>
// kernel: wffn_naf_forward.1
$region0: #{wffn_naf_forward.1}
  #allocation0 [shape = 'u32[]', space=smem, size = 0x4, offset = 0x4, fixed_abs, tag = 'smem constant byte address 0x4 - core index']
  #allocation1 [shape = 'u32[144,128]{1,0:T(1,128)}', space=vmem, size = 0x12000, scoped, tag = 'internal scratch']
  %s0 = inlined_call_operand.vmem [shape: f32[2,8,256], index: 0, kind: input, shape index: {}]
  %s1 = inlined_call_operand.vmem [shape: f32[128,8], index: 1, kind: input, shape index: {}]
  %s2 = inlined_call_operand.vmem [shape: f32[32,1], index: 2, kind: input, shape index: {}]
  %s3 = inlined_call_operand.vmem [shape: f32[8,16], index: 3, kind: input, shape index: {}]
  %s4 = inlined_call_operand.vmem [shape: f32[8,1], index: 4, kind: input, shape index: {}]
  %s5 = inlined_call_operand.vmem [shape: f32[2,8,256], index: 5, kind: output, shape index: {}]
  %s6 = sld [smem:[#allocation0]]
  $region53: #{wffn_naf_forward.1} parent=0
    _
  %s8 = ssub.s32 1, %s6
  %s9 = scalar_select 0, %s8, %s6
  loop: start=0, step=1, limit=4
  $region2: #{wffn_naf_forward.1} parent=0 // loop_pre_header
    _
  $region3: #{wffn_naf_forward.1} parent=0 // loop_header
    %s11 = sphi 0, %s15
    %p12 = scmp.ge.s32.totalorder %s11, 4
    %s18 = sphi 0, %s30
    %s19 = sphi 0, %s26
    %s20 = sphi 0, %s18
    %s21 = sphi 0, %s19
    %s22 = sphi 0, %s20
    %s23 = sphi 0, %s21
    %s35 = sphi 0, %s37
    %s38 = sphi 0, %s35
    %s39 = sphi 0, %s38
    %s55 = sphi 0, %s39
    %s59 = sphi 0, %s59
    %s61 = sphi 0, %s59
    %s62 = sphi 0, %s61
    %s76 = sphi 0, %s62
    %s80 = sphi 0, %s80
    %s82 = sphi 0, %s80
    %s83 = sphi 0, %s82
    %s97 = sphi 0, %s83
    %s101 = sphi 0, %s101
    %s103 = sphi 0, %s101
    %s104 = sphi 0, %s103
    %s118 = sphi 0, %s104
    %s122 = sphi 0, %s122
    %s124 = sphi 0, %s122
    %s125 = sphi 0, %s124
    %s139 = sphi 0, %s125
    %s147 = sphi 0, %s149
    %s150 = sphi 0, %s147
    %s151 = sphi 0, %s150
    %s167 = sphi 0, %s151
  $region4: #{wffn_naf_forward.1} parent=0 // loop_header_branch
    %14 = sbr.rel (%p12) target = $region8
  $region5: #{wffn_naf_forward.1} parent=0 // loop_body
    %s16 = ssub.s32 %s11, 1
    %s17 = ssub.s32 %s11, 2
    %s24 = sadd.s32 1, %s19
    %p25 = scmp.ge.s32.totalorder %s24, 1
    %s26 = scalar_select %p25, 0, %s24
    %s27 = sadd.s32 1, %s18
    %s28 = scalar_select %p25, %s27, %s18
    %p29 = scmp.ge.s32.totalorder %s28, 2
    %s30 = scalar_select %p29, 0, %s28
    %s31 = ssub.s32 %s18, %s30
    %s32 = ssub.s32 %s19, %s26
    %s33 = sor.u32 %s31, %s32
    %p34 = scmp.eq.s32.totalorder %s33, 0
    %s36 = sadd.s32 %s35, 1
    %s37 = scalar_select %p34, %s35, %s36
    %p40 = pneg %p34
    %p41 = scmp.eq.s32.totalorder %s11, 1
    %p42 = por %p40, %p41
    %p43 = scmp.ne.s32.totalorder %s35, %s38
    %p44 = scmp.eq.s32.totalorder %s11, 0
    %p45 = por %p43, %p44
    %p46 = scmp.ne.s32.totalorder %s35, %s38
    %p47 = scmp.eq.s32.totalorder %s16, 1
    %p48 = por %p46, %p47
    %p49 = scmp.ne.s32.totalorder %s38, %s39
    %p50 = scmp.eq.s32.totalorder %s16, 0
    %p51 = por %p49, %p50
    %p52 = scmp.ne.s32.totalorder %s38, %s39
    %p53 = scmp.eq.s32.totalorder %s17, 1
    %p54 = por %p52, %p53
    %p56 = scmp.ne.s32.totalorder %s39, %s55
    %p57 = scmp.eq.s32.totalorder %s17, 0
    %p58 = por %p56, %p57
    %s60 = sadd.s32 %s59, 1
    %p63 = scmp.eq.s32.totalorder %s11, 1
    %p64 = scmp.ne.s32.totalorder %s59, %s61
    %p65 = scmp.eq.s32.totalorder %s11, 0
    %p66 = por %p64, %p65
    %p67 = scmp.ne.s32.totalorder %s59, %s61
    %p68 = scmp.eq.s32.totalorder %s16, 1
    %p69 = por %p67, %p68
    %p70 = scmp.ne.s32.totalorder %s61, %s62
    %p71 = scmp.eq.s32.totalorder %s16, 0
    %p72 = por %p70, %p71
    %p73 = scmp.ne.s32.totalorder %s61, %s62
    %p74 = scmp.eq.s32.totalorder %s17, 1
    %p75 = por %p73, %p74
    %p77 = scmp.ne.s32.totalorder %s62, %s76
    %p78 = scmp.eq.s32.totalorder %s17, 0
    %p79 = por %p77, %p78
    %s81 = sadd.s32 %s80, 1
    %p84 = scmp.eq.s32.totalorder %s11, 1
    %p85 = scmp.ne.s32.totalorder %s80, %s82
    %p86 = scmp.eq.s32.totalorder %s11, 0
    %p87 = por %p85, %p86
    %p88 = scmp.ne.s32.totalorder %s80, %s82
    %p89 = scmp.eq.s32.totalorder %s16, 1
    %p90 = por %p88, %p89
    %p91 = scmp.ne.s32.totalorder %s82, %s83
    %p92 = scmp.eq.s32.totalorder %s16, 0
    %p93 = por %p91, %p92
    %p94 = scmp.ne.s32.totalorder %s82, %s83
    %p95 = scmp.eq.s32.totalorder %s17, 1
    %p96 = por %p94, %p95
    %p98 = scmp.ne.s32.totalorder %s83, %s97
    %p99 = scmp.eq.s32.totalorder %s17, 0
    %p100 = por %p98, %p99
    %s102 = sadd.s32 %s101, 1
    %p105 = scmp.eq.s32.totalorder %s11, 1
    %p106 = scmp.ne.s32.totalorder %s101, %s103
    %p107 = scmp.eq.s32.totalorder %s11, 0
    %p108 = por %p106, %p107
    %p109 = scmp.ne.s32.totalorder %s101, %s103
    %p110 = scmp.eq.s32.totalorder %s16, 1
    %p111 = por %p109, %p110
    %p112 = scmp.ne.s32.totalorder %s103, %s104
    %p113 = scmp.eq.s32.totalorder %s16, 0
    %p114 = por %p112, %p113
    %p115 = scmp.ne.s32.totalorder %s103, %s104
    %p116 = scmp.eq.s32.totalorder %s17, 1
    %p117 = por %p115, %p116
    %p119 = scmp.ne.s32.totalorder %s104, %s118
    %p120 = scmp.eq.s32.totalorder %s17, 0
    %p121 = por %p119, %p120
    %s123 = sadd.s32 %s122, 1
    %p126 = scmp.eq.s32.totalorder %s11, 1
    %p127 = scmp.ne.s32.totalorder %s122, %s124
    %p128 = scmp.eq.s32.totalorder %s11, 0
    %p129 = por %p127, %p128
    %p130 = scmp.ne.s32.totalorder %s122, %s124
    %p131 = scmp.eq.s32.totalorder %s16, 1
    %p132 = por %p130, %p131
    %p133 = scmp.ne.s32.totalorder %s124, %s125
    %p134 = scmp.eq.s32.totalorder %s16, 0
    %p135 = por %p133, %p134
    %p136 = scmp.ne.s32.totalorder %s124, %s125
    %p137 = scmp.eq.s32.totalorder %s17, 1
    %p138 = por %p136, %p137
    %p140 = scmp.ne.s32.totalorder %s125, %s139
    %p141 = scmp.eq.s32.totalorder %s17, 0
    %p142 = por %p140, %p141
    %s143 = ssub.s32 %s18, %s30
    %s144 = ssub.s32 %s19, %s26
    %s145 = sor.u32 %s143, %s144
    %p146 = scmp.eq.s32.totalorder %s145, 0
    %s148 = sadd.s32 %s147, 1
    %s149 = scalar_select %p146, %s147, %s148
    %p152 = pneg %p146
    %p153 = scmp.eq.s32.totalorder %s11, 1
    %p154 = por %p152, %p153
    %p155 = scmp.ne.s32.totalorder %s147, %s150
    %p156 = scmp.eq.s32.totalorder %s11, 0
    %p157 = por %p155, %p156
    %p158 = scmp.ne.s32.totalorder %s147, %s150
    %p159 = scmp.eq.s32.totalorder %s16, 1
    %p160 = por %p158, %p159
    %p161 = scmp.ne.s32.totalorder %s150, %s151
    %p162 = scmp.eq.s32.totalorder %s16, 0
    %p163 = por %p161, %p162
    %p164 = scmp.ne.s32.totalorder %s150, %s151
    %p165 = scmp.eq.s32.totalorder %s17, 1
    %p166 = por %p164, %p165
    %p168 = scmp.ne.s32.totalorder %s151, %s167
    %p169 = scmp.eq.s32.totalorder %s17, 0
    %p170 = por %p168, %p169
    %p171 = scmp.le.s32.totalorder 1, %s11
    %p172 = scmp.lt.s32.totalorder %s11, 3
    %p173 = pnand %p171, %p172
    %p174 = pneg %p173
    // Predicated region
    $region9: #{wffn_naf_forward.1} parent=5 // pred_check
      _
    $region10: #{wffn_naf_forward.1} parent=5 // pred_check_branch
      %176 = sbr.rel (%p173) target = $region12
    $region11: #{wffn_naf_forward.1} parent=5 // pred_region
      %s177 = ssub.s32 %s11, 1
      // Predicated region
      $region13: #{wffn_naf_forward.1} parent=11 // pred_check
        %p178 = pneg %p72
      $region14: #{wffn_naf_forward.1} parent=11 // pred_check_branch
        %180 = sbr.rel (%p178) target = $region16
      $region15: #{wffn_naf_forward.1} parent=11 // pred_region
        _
      $region16: #{wffn_naf_forward.1} parent=11 // pred_fallthru
        _
      // Predicated region
      $region17: #{wffn_naf_forward.1} parent=11 // pred_check
        %p181 = pneg %p93
      $region18: #{wffn_naf_forward.1} parent=11 // pred_check_branch
        %183 = sbr.rel (%p181) target = $region20
      $region19: #{wffn_naf_forward.1} parent=11 // pred_region
        _
      $region20: #{wffn_naf_forward.1} parent=11 // pred_fallthru
        _
      // Predicated region
      $region21: #{wffn_naf_forward.1} parent=11 // pred_check
        %p184 = pneg %p114
      $region22: #{wffn_naf_forward.1} parent=11 // pred_check_branch
        %186 = sbr.rel (%p184) target = $region24
      $region23: #{wffn_naf_forward.1} parent=11 // pred_region
        _
      $region24: #{wffn_naf_forward.1} parent=11 // pred_fallthru
        _
      // Predicated region
      $region25: #{wffn_naf_forward.1} parent=11 // pred_check
        %p187 = pneg %p135
      $region26: #{wffn_naf_forward.1} parent=11 // pred_check_branch
        %189 = sbr.rel (%p187) target = $region28
      $region27: #{wffn_naf_forward.1} parent=11 // pred_region
        _
      $region28: #{wffn_naf_forward.1} parent=11 // pred_fallthru
        _
    $region12: #{wffn_naf_forward.1} parent=5 // pred_fallthru
      _
    %p190 = scmp.lt.s32.totalorder %s11, 2
    // Predicated region
    $region29: #{wffn_naf_forward.1} parent=5 // pred_check
      %p191 = pneg %p190
    $region30: #{wffn_naf_forward.1} parent=5 // pred_check_branch
      %193 = sbr.rel (%p191) target = $region32
    $region31: #{wffn_naf_forward.1} parent=5 // pred_region
      // Predicated region
      $region33: #{wffn_naf_forward.1} parent=31 // pred_check
        %p194 = pneg %p45
      $region34: #{wffn_naf_forward.1} parent=31 // pred_check_branch
        %196 = sbr.rel (%p194) target = $region36
      $region35: #{wffn_naf_forward.1} parent=31 // pred_region
        %s197 = smul.u32 2, %s19
        %p198 = scmp.lt.s32.totalorder %s18, 1
        %s199 = scalar_select %p198, %s18, 1
        %p200 = scmp.lt.s32.totalorder %s197, 1
        %s201 = scalar_select %p200, %s197, 1
        %s202 = smul.addr %s199, 2
        %s203 = sadd.s32 %s201, %s202
        %s204 = smul.addr %s203, 8
        %s205 = scalar_lea.vmem %s0, %s204
        %s206 = smul.u32 2, %s19
      $region36: #{wffn_naf_forward.1} parent=31 // pred_fallthru
        _
    $region32: #{wffn_naf_forward.1} parent=5 // pred_fallthru
      _
    %p207 = scmp.le.s32.totalorder 1, %s11
    %p208 = scmp.lt.s32.totalorder %s11, 3
    %p209 = pnand %p207, %p208
    %p210 = pneg %p209
    // Predicated region
    $region37: #{wffn_naf_forward.1} parent=5 // pred_check
      _
    $region38: #{wffn_naf_forward.1} parent=5 // pred_check_branch
      %212 = sbr.rel (%p209) target = $region40
    $region39: #{wffn_naf_forward.1} parent=5 // pred_region
      %s213 = ssub.s32 %s11, 1
      %s214 = smul.u32 2, %s21
      %p215 = scmp.lt.s32.totalorder %s20, 1
      %s216 = scalar_select %p215, %s20, 1
      %p217 = scmp.lt.s32.totalorder %s214, 1
      %s218 = scalar_select %p217, %s214, 1
      %s219 = smul.addr %s216, 2
      %s220 = sadd.s32 %s218, %s219
      %s221 = smul.addr %s220, 8
      %s222 = scalar_lea.vmem %s0, %s221
      %p223 = pneg %p51
      %p224 = pneg %p48
      %p225 = pneg %p72
      %p226 = pneg %p69
      %p227 = pneg %p93
      %p228 = pneg %p90
      %p229 = pneg %p114
      %p230 = pneg %p111
      %p231 = pneg %p135
      %p232 = pneg %p132
      %p233 = pneg %p163
      %p234 = pneg %p160
      %s235 = smul.u32 2, %s21
      %p236 = scmp.lt.s32.totalorder %s20, 1
      %s237 = scalar_select %p236, %s20, 1
      %p238 = scmp.lt.s32.totalorder %s235, 1
      %s239 = scalar_select %p238, %s235, 1
      %s240 = smul.addr %s237, 2
      %s241 = sadd.s32 %s239, %s240
      %s242 = smul.addr %s241, 8
      %s243 = scalar_lea.vmem %s5, %s242
      %s244 = smul.u32 2, %s21
      %p245 = scmp.lt.s32.totalorder %s20, 1
      %s246 = scalar_select %p245, %s20, 1
      %p247 = scmp.lt.s32.totalorder %s244, 1
      %s248 = scalar_select %p247, %s244, 1
      %s249 = smul.addr %s246, 2
      %s250 = sadd.s32 %s248, %s249
      %s251 = smul.addr %s250, 8
      %s252 = scalar_lea.vmem %s0, %s251
      %s253 = smul.u32 2, %s21
      %s254 = smul.u32 2, %s21
      %p255 = scmp.lt.s32.totalorder %s20, 1
      %s256 = scalar_select %p255, %s20, 1
      %p257 = scmp.lt.s32.totalorder %s254, 1
      %s258 = scalar_select %p257, %s254, 1
      %s259 = smul.addr %s256, 2
      %s260 = sadd.s32 %s258, %s259
      %s261 = smul.addr %s260, 8
      %s262 = scalar_lea.vmem %s5, %s261
      %s263 = smul.u32 2, %s21
      %v264 = vld [vmem:[%s252] sm:$0xff]
      %v265 = vld [vmem:[%s252 + $0x8] sm:$0xff]
      %v266 = vld [vmem:[%s1] sm:$0xff]
      %v267 = vld [vmem:[%s1 + $0x8] sm:$0xff]
      %v268 = vld [vmem:[%s1 + $0x10] sm:$0xff]
      %v269 = vld [vmem:[%s1 + $0x18] sm:$0xff]
      %v270 = vld [vmem:[%s1 + $0x20] sm:$0xff]
      %v271 = vld [vmem:[%s1 + $0x28] sm:$0xff]
      %v272 = vld [vmem:[%s1 + $0x30] sm:$0xff]
      %v273 = vld [vmem:[%s1 + $0x38] sm:$0xff]
      %v274 = vld [vmem:[%s1 + $0x40] sm:$0xff]
      %v275 = vld [vmem:[%s1 + $0x48] sm:$0xff]
      %v276 = vld [vmem:[%s1 + $0x50] sm:$0xff]
      %v277 = vld [vmem:[%s1 + $0x58] sm:$0xff]
      %v278 = vld [vmem:[%s1 + $0x60] sm:$0xff]
      %v279 = vld [vmem:[%s1 + $0x68] sm:$0xff]
      %v280 = vld [vmem:[%s1 + $0x70] sm:$0xff]
      %v281 = vld [vmem:[%s1 + $0x78] sm:$0xff]
      %vm282 = vcmask 64512
      %v284 = vsel %vm282, %v266, 0
      %v287 = vsel %vm282, %v267, 0
      %v290 = vsel %vm282, %v268, 0
      %v293 = vsel %vm282, %v269, 0
      %v296 = vsel %vm282, %v270, 0
      %v299 = vsel %vm282, %v271, 0
      %v302 = vsel %vm282, %v272, 0
      %v305 = vsel %vm282, %v273, 0
      %v308 = vsel %vm282, %v274, 0
      %v311 = vsel %vm282, %v275, 0
      %v314 = vsel %vm282, %v276, 0
      %v317 = vsel %vm282, %v277, 0
      %v320 = vsel %vm282, %v278, 0
      %v323 = vsel %vm282, %v279, 0
      %v326 = vsel %vm282, %v280, 0
      %v329 = vsel %vm282, %v281, 0
      %331 = vmatprep.subr.mxu0 %v265
      %332 = vmatpush1.msra.mxu0 %v264
      %333 = vmatprep.subr.mxu0 0.0
      %334 = vmatpush1.msra.mxu0 0.0
      %335 = vmatprep.subr.mxu0 0.0
      %336 = vmatpush1.msra.mxu0 0.0
      %337 = vmatprep.subr.mxu0 0.0
      %338 = vmatpush1.msra.mxu0 0.0
      %339 = vmatprep.subr.mxu0 0.0
      %340 = vmatpush1.msra.mxu0 0.0
      %341 = vmatprep.subr.mxu0 0.0
      %342 = vmatpush1.msra.mxu0 0.0
      %343 = vmatprep.subr.mxu0 0.0
      %344 = vmatpush1.msra.mxu0 0.0
      %345 = vmatprep.subr.mxu0 0.0
      %346 = vmatpush1.msra.mxu0 0.0
      %347 = vmatprep.subr.mxu0 0.0
      %348 = vmatpush1.msra.mxu0 0.0
      %349 = vmatprep.subr.mxu0 0.0
      %350 = vmatpush1.msra.mxu0 0.0
      %351 = vmatprep.subr.mxu0 0.0
      %352 = vmatpush1.msra.mxu0 0.0
      %353 = vmatprep.subr.mxu0 0.0
      %354 = vmatpush1.msra.mxu0 0.0
      %355 = vmatprep.subr.mxu0 0.0
      %356 = vmatpush1.msra.mxu0 0.0
      %357 = vmatprep.subr.mxu0 0.0
      %358 = vmatpush1.msra.mxu0 0.0
      %359 = vmatprep.subr.mxu0 0.0
      %360 = vmatpush1.msra.mxu0 0.0
      %361 = vmatprep.subr.mxu0 0.0
      %362 = vmatpush1.msra.mxu0 0.0
      %363 = vmatprep.subr.mxu0 0.0
      %364 = vmatpush1.msra.mxu0 0.0
      %365 = vmatprep.subr.mxu0 0.0
      %366 = vmatpush1.msra.mxu0 0.0
      %367 = vmatprep.subr.mxu0 0.0
      %368 = vmatpush1.msra.mxu0 0.0
      %369 = vmatprep.subr.mxu0 0.0
      %370 = vmatpush1.msra.mxu0 0.0
      %371 = vmatprep.subr.mxu0 0.0
      %372 = vmatpush1.msra.mxu0 0.0
      %373 = vmatprep.subr.mxu0 0.0
      %374 = vmatpush1.msra.mxu0 0.0
      %375 = vmatprep.subr.mxu0 0.0
      %376 = vmatpush1.msra.mxu0 0.0
      %377 = vmatprep.subr.mxu0 0.0
      %378 = vmatpush1.msra.mxu0 0.0
      %379 = vmatprep.subr.mxu0 0.0
      %380 = vmatpush1.msra.mxu0 0.0
      %381 = vmatprep.subr.mxu0 0.0
      %382 = vmatpush1.msra.mxu0 0.0
      %383 = vmatprep.subr.mxu0 0.0
      %384 = vmatpush1.msra.mxu0 0.0
      %385 = vmatprep.subr.mxu0 0.0
      %386 = vmatpush1.msra.mxu0 0.0
      %387 = vmatprep.subr.mxu0 0.0
      %388 = vmatpush1.msra.mxu0 0.0
      %389 = vmatprep.subr.mxu0 0.0
      %390 = vmatpush1.msra.mxu0 0.0
      %391 = vmatprep.subr.mxu0 0.0
      %392 = vmatpush1.msra.mxu0 0.0
      %393 = vmatprep.subr.mxu0 0.0
      %394 = vmatpush1.msra.mxu0 0.0
      %395 = vmatprep.mubr.f32.mxu0 0.0
      %396 = vmatmul.mubr.f32.gmra.mrb[0].mxu0 %v284
      %v397 = vpop.f32.mrb[0].mxu0
      %v398 = vadd.f32 0.0, %v397
      %v399 = vpop.f32.mrb[0].mxu0
      %v400 = vadd.f32 0.0, %v399
      %401 = vmatprep.mubr.f32.mxu0 0.0
      %402 = vmatmul.mubr.f32.gmra.mrb[0].mxu0 %v287
      %v403 = vpop.f32.mrb[0].mxu0
      %v404 = vadd.f32 0.0, %v403
      %v405 = vpop.f32.mrb[0].mxu0
      %v406 = vadd.f32 0.0, %v405
      %407 = vmatprep.mubr.f32.mxu0 0.0
      %408 = vmatmul.mubr.f32.gmra.mrb[0].mxu0 %v290
      %v409 = vpop.f32.mrb[0].mxu0
      %v410 = vadd.f32 0.0, %v409
      %v411 = vpop.f32.mrb[0].mxu0
      %v412 = vadd.f32 0.0, %v411
      %413 = vmatprep.mubr.f32.mxu0 0.0
      %414 = vmatmul.mubr.f32.gmra.mrb[0].mxu0 %v293
      %v415 = vpop.f32.mrb[0].mxu0
      %v416 = vadd.f32 0.0, %v415
      %v417 = vpop.f32.mrb[0].mxu0
      %v418 = vadd.f32 0.0, %v417
      %419 = vmatprep.mubr.f32.mxu0 0.0
      %420 = vmatmul.mubr.f32.gmra.mrb[0].mxu0 %v296
      %v421 = vpop.f32.mrb[0].mxu0
      %v422 = vadd.f32 0.0, %v421
      %v423 = vpop.f32.mrb[0].mxu0
      %v424 = vadd.f32 0.0, %v423
      %425 = vmatprep.mubr.f32.mxu0 0.0
      %426 = vmatmul.mubr.f32.gmra.mrb[0].mxu0 %v299
      %v427 = vpop.f32.mrb[0].mxu0
      %v428 = vadd.f32 0.0, %v427
      %v429 = vpop.f32.mrb[0].mxu0
      %v430 = vadd.f32 0.0, %v429
      %431 = vmatprep.mubr.f32.mxu0 0.0
      %432 = vmatmul.mubr.f32.gmra.mrb[0].mxu0 %v302
      %v433 = vpop.f32.mrb[0].mxu0
      %v434 = vadd.f32 0.0, %v433
      %v435 = vpop.f32.mrb[0].mxu0
      %v436 = vadd.f32 0.0, %v435
      %437 = vmatprep.mubr.f32.mxu0 0.0
      %438 = vmatmul.mubr.f32.gmra.mrb[0].mxu0 %v305
      %v439 = vpop.f32.mrb[0].mxu0
      %v440 = vadd.f32 0.0, %v439
      %v441 = vpop.f32.mrb[0].mxu0
      %v442 = vadd.f32 0.0, %v441
      %443 = vmatprep.mubr.f32.mxu0 0.0
      %444 = vmatmul.mubr.f32.gmra.mrb[0].mxu0 %v308
      %v445 = vpop.f32.mrb[0].mxu0
      %v446 = vadd.f32 0.0, %v445
      %v447 = vpop.f32.mrb[0].mxu0
      %v448 = vadd.f32 0.0, %v447
      %449 = vmatprep.mubr.f32.mxu0 0.0
      %450 = vmatmul.mubr.f32.gmra.mrb[0].mxu0 %v311
      %v451 = vpop.f32.mrb[0].mxu0
      %v452 = vadd.f32 0.0, %v451
      %v453 = vpop.f32.mrb[0].mxu0
      %v454 = vadd.f32 0.0, %v453
      %455 = vmatprep.mubr.f32.mxu0 0.0
      %456 = vmatmul.mubr.f32.gmra.mrb[0].mxu0 %v314
      %v457 = vpop.f32.mrb[0].mxu0
      %v458 = vadd.f32 0.0, %v457
      %v459 = vpop.f32.mrb[0].mxu0
      %v460 = vadd.f32 0.0, %v459
      %461 = vmatprep.mubr.f32.mxu0 0.0
      %462 = vmatmul.mubr.f32.gmra.mrb[0].mxu0 %v317
      %v463 = vpop.f32.mrb[0].mxu0
      %v464 = vadd.f32 0.0, %v463
      %v465 = vpop.f32.mrb[0].mxu0
      %v466 = vadd.f32 0.0, %v465
      %467 = vmatprep.mubr.f32.mxu0 0.0
      %468 = vmatmul.mubr.f32.gmra.mrb[0].mxu0 %v320
      %v469 = vpop.f32.mrb[0].mxu0
      %v470 = vadd.f32 0.0, %v469
      %v471 = vpop.f32.mrb[0].mxu0
      %v472 = vadd.f32 0.0, %v471
      %473 = vmatprep.mubr.f32.mxu0 0.0
      %474 = vmatmul.mubr.f32.gmra.mrb[0].mxu0 %v323
      %v475 = vpop.f32.mrb[0].mxu0
      %v476 = vadd.f32 0.0, %v475
      %v477 = vpop.f32.mrb[0].mxu0
      %v478 = vadd.f32 0.0, %v477
      %479 = vmatprep.mubr.f32.mxu0 0.0
      %480 = vmatmul.mubr.f32.gmra.mrb[0].mxu0 %v326
      %v481 = vpop.f32.mrb[0].mxu0
      %v482 = vadd.f32 0.0, %v481
      %v483 = vpop.f32.mrb[0].mxu0
      %v484 = vadd.f32 0.0, %v483
      %485 = vmatprep.mubr.f32.mxu0 0.0
      %486 = vmatmul.mubr.f32.gmra.mrb[0].mxu0 %v329
      %v487 = vpop.f32.mrb[0].mxu0
      %v488 = vadd.f32 0.0, %v487
      %v489 = vpop.f32.mrb[0].mxu0
      %v490 = vadd.f32 0.0, %v489
      %491 = vdwg.mxu0
      %v492 = vlaneseq
      %v493 = vand.u32 %v492, 127
      %v494 = vadd.s32 %v493, 128
      %v495 = vcvt.s32.f32 %v493
      %v496 = vcvt.s32.f32 %v494
      %v497 = vmul.f32 %v495, 0.5
      %v498 = vmul.f32 %v496, 0.5
      %v499 = vfloor.f32 %v497
      %v500 = vfloor.f32 %v498
      %v501 = vmul.f32 %v499, 2.0
      %v502 = vmul.f32 %v500, 2.0
      %v503 = vsub.f32 %v495, %v501
      %v504 = vsub.f32 %v496, %v502
      %v505 = vadd.f32 %v495, 0.5
      %v506 = vadd.f32 %v496, 0.5
      %v507 = vmul.f32 %v505, 0.0625
      %v508 = vmul.f32 %v506, 0.0625
      %v509 = vfloor.f32 %v507
      %v510 = vfloor.f32 %v508
      %v511 = vmul.f32 %v509, 0.5
      %v512 = vmul.f32 %v510, 0.5
      %v513 = vfloor.f32 %v511
      %v514 = vfloor.f32 %v512
      %v515 = vmul.f32 %v513, 2.0
      %v516 = vmul.f32 %v514, 2.0
      %v517 = vsub.f32 %v509, %v515
      %v518 = vsub.f32 %v510, %v516
      %vm519 = vcmp.lt.f32.partialorder %v503, 0.5
      %vm520 = vcmp.lt.f32.partialorder %v504, 0.5
      %vm521 = vcmp.lt.f32.partialorder %v517, 0.5
      %vm522 = vcmp.lt.f32.partialorder %v518, 0.5
      %523 = vrot.lane.b32.xlu0 %v446, 112
      %v524 = vpop.permute.xlu0 %523
      %525 = vrot.lane.b32.xlu0 %v452, 112
      %v526 = vpop.permute.xlu0 %525
      %527 = vrot.lane.b32.xlu0 %v458, 112
      %v528 = vpop.permute.xlu0 %527
      %529 = vrot.lane.b32.xlu0 %v464, 112
      %v530 = vpop.permute.xlu0 %529
      %531 = vrot.lane.b32.xlu0 %v448, 112
      %v532 = vpop.permute.xlu0 %531
      %533 = vrot.lane.b32.xlu0 %v454, 112
      %v534 = vpop.permute.xlu0 %533
      %535 = vrot.lane.b32.xlu0 %v460, 112
      %v536 = vpop.permute.xlu0 %535
      %537 = vrot.lane.b32.xlu0 %v466, 112
      %v538 = vpop.permute.xlu0 %537
      %vm539 = vcmp.lt.s32.totalorder %v493, 112
      %v540 = vsel %vm539, %v524, %v532
      %v541 = vsel %vm539, %v526, %v534
      %v542 = vsel %vm539, %v528, %v536
      %v543 = vsel %vm539, %v530, %v538
      %v544 = vsel %vm539, %v532, %v524
      %v545 = vsel %vm539, %v534, %v526
      %v546 = vsel %vm539, %v536, %v528
      %v547 = vsel %vm539, %v538, %v530
      %548 = vrot.lane.b32.xlu0 %v446, 16
      %v549 = vpop.permute.xlu0 %548
      %550 = vrot.lane.b32.xlu0 %v452, 16
      %v551 = vpop.permute.xlu0 %550
      %552 = vrot.lane.b32.xlu0 %v458, 16
      %v553 = vpop.permute.xlu0 %552
      %554 = vrot.lane.b32.xlu0 %v464, 16
      %v555 = vpop.permute.xlu0 %554
      %556 = vrot.lane.b32.xlu0 %v448, 16
      %v557 = vpop.permute.xlu0 %556
      %558 = vrot.lane.b32.xlu0 %v454, 16
      %v559 = vpop.permute.xlu0 %558
      %560 = vrot.lane.b32.xlu0 %v460, 16
      %v561 = vpop.permute.xlu0 %560
      %562 = vrot.lane.b32.xlu0 %v466, 16
      %v563 = vpop.permute.xlu0 %562
      %vm564 = vcmp.lt.s32.totalorder %v493, 16
      %v565 = vsel %vm564, %v549, %v557
      %v566 = vsel %vm564, %v551, %v559
      %v567 = vsel %vm564, %v553, %v561
      %v568 = vsel %vm564, %v555, %v563
      %v569 = vsel %vm564, %v557, %v549
      %v570 = vsel %vm564, %v559, %v551
      %v571 = vsel %vm564, %v561, %v553
      %v572 = vsel %vm564, %v563, %v555
      %v573 = vsel %vm521, %v540, %v569
      %v574 = vsel %vm522, %v544, %v565
      %v575 = vsel %vm521, %v541, %v570
      %v576 = vsel %vm522, %v545, %v566
      %v577 = vsel %vm521, %v542, %v571
      %v578 = vsel %vm522, %v546, %v567
      %v579 = vsel %vm521, %v543, %v572
      %v580 = vsel %vm522, %v547, %v568
      %v581 = vadd.f32 %v398, %v573
      %v582 = vadd.f32 %v400, %v574
      %v583 = vadd.f32 %v404, %v575
      %v584 = vadd.f32 %v406, %v576
      %v585 = vadd.f32 %v410, %v577
      %v586 = vadd.f32 %v412, %v578
      %v587 = vadd.f32 %v416, %v579
      %v588 = vadd.f32 %v418, %v580
      %589 = vrot.lane.b32.xlu0 %v470, 112
      %v590 = vpop.permute.xlu0 %589
      %591 = vrot.lane.b32.xlu0 %v476, 112
      %v592 = vpop.permute.xlu0 %591
      %593 = vrot.lane.b32.xlu0 %v482, 112
      %v594 = vpop.permute.xlu0 %593
      %595 = vrot.lane.b32.xlu0 %v488, 112
      %v596 = vpop.permute.xlu0 %595
      %597 = vrot.lane.b32.xlu0 %v472, 112
      %v598 = vpop.permute.xlu0 %597
      %599 = vrot.lane.b32.xlu0 %v478, 112
      %v600 = vpop.permute.xlu0 %599
      %601 = vrot.lane.b32.xlu0 %v484, 112
      %v602 = vpop.permute.xlu0 %601
      %603 = vrot.lane.b32.xlu0 %v490, 112
      %v604 = vpop.permute.xlu0 %603
      %v605 = vsel %vm539, %v590, %v598
      %v606 = vsel %vm539, %v592, %v600
      %v607 = vsel %vm539, %v594, %v602
      %v608 = vsel %vm539, %v596, %v604
      %v609 = vsel %vm539, %v598, %v590
      %v610 = vsel %vm539, %v600, %v592
      %v611 = vsel %vm539, %v602, %v594
      %v612 = vsel %vm539, %v604, %v596
      %613 = vrot.lane.b32.xlu0 %v470, 16
      %v614 = vpop.permute.xlu0 %613
      %615 = vrot.lane.b32.xlu0 %v476, 16
      %v616 = vpop.permute.xlu0 %615
      %617 = vrot.lane.b32.xlu0 %v482, 16
      %v618 = vpop.permute.xlu0 %617
      %619 = vrot.lane.b32.xlu0 %v488, 16
      %v620 = vpop.permute.xlu0 %619
      %621 = vrot.lane.b32.xlu0 %v472, 16
      %v622 = vpop.permute.xlu0 %621
      %623 = vrot.lane.b32.xlu0 %v478, 16
      %v624 = vpop.permute.xlu0 %623
      %625 = vrot.lane.b32.xlu0 %v484, 16
      %v626 = vpop.permute.xlu0 %625
      %627 = vrot.lane.b32.xlu0 %v490, 16
      %v628 = vpop.permute.xlu0 %627
      %v629 = vsel %vm564, %v614, %v622
      %v630 = vsel %vm564, %v616, %v624
      %v631 = vsel %vm564, %v618, %v626
      %v632 = vsel %vm564, %v620, %v628
      %v633 = vsel %vm564, %v622, %v614
      %v634 = vsel %vm564, %v624, %v616
      %v635 = vsel %vm564, %v626, %v618
      %v636 = vsel %vm564, %v628, %v620
      %v637 = vsel %vm521, %v605, %v633
      %v638 = vsel %vm522, %v609, %v629
      %v639 = vsel %vm521, %v606, %v634
      %v640 = vsel %vm522, %v610, %v630
      %v641 = vsel %vm521, %v607, %v635
      %v642 = vsel %vm522, %v611, %v631
      %v643 = vsel %vm521, %v608, %v636
      %v644 = vsel %vm522, %v612, %v632
      %v645 = vadd.f32 %v422, %v637
      %v646 = vadd.f32 %v424, %v638
      %v647 = vadd.f32 %v428, %v639
      %v648 = vadd.f32 %v430, %v640
      %v649 = vadd.f32 %v434, %v641
      %v650 = vadd.f32 %v436, %v642
      %v651 = vadd.f32 %v440, %v643
      %v652 = vadd.f32 %v442, %v644
      %653 = vrot.lane.b32.xlu0 %v645, 127
      %v654 = vpop.permute.xlu0 %653
      %655 = vrot.lane.b32.xlu0 %v647, 127
      %v656 = vpop.permute.xlu0 %655
      %657 = vrot.lane.b32.xlu0 %v649, 127
      %v658 = vpop.permute.xlu0 %657
      %659 = vrot.lane.b32.xlu0 %v651, 127
      %v660 = vpop.permute.xlu0 %659
      %661 = vrot.lane.b32.xlu0 %v646, 127
      %v662 = vpop.permute.xlu0 %661
      %663 = vrot.lane.b32.xlu0 %v648, 127
      %v664 = vpop.permute.xlu0 %663
      %665 = vrot.lane.b32.xlu0 %v650, 127
      %v666 = vpop.permute.xlu0 %665
      %667 = vrot.lane.b32.xlu0 %v652, 127
      %v668 = vpop.permute.xlu0 %667
      %vm669 = vcmp.lt.s32.totalorder %v493, 127
      %v670 = vsel %vm669, %v654, %v662
      %v671 = vsel %vm669, %v656, %v664
      %v672 = vsel %vm669, %v658, %v666
      %v673 = vsel %vm669, %v660, %v668
      %v674 = vsel %vm669, %v662, %v654
      %v675 = vsel %vm669, %v664, %v656
      %v676 = vsel %vm669, %v666, %v658
      %v677 = vsel %vm669, %v668, %v660
      %678 = vrot.lane.b32.xlu0 %v645, 1
      %v679 = vpop.permute.xlu0 %678
      %680 = vrot.lane.b32.xlu0 %v647, 1
      %v681 = vpop.permute.xlu0 %680
      %682 = vrot.lane.b32.xlu0 %v649, 1
      %v683 = vpop.permute.xlu0 %682
      %684 = vrot.lane.b32.xlu0 %v651, 1
      %v685 = vpop.permute.xlu0 %684
      %686 = vrot.lane.b32.xlu0 %v646, 1
      %v687 = vpop.permute.xlu0 %686
      %688 = vrot.lane.b32.xlu0 %v648, 1
      %v689 = vpop.permute.xlu0 %688
      %690 = vrot.lane.b32.xlu0 %v650, 1
      %v691 = vpop.permute.xlu0 %690
      %692 = vrot.lane.b32.xlu0 %v652, 1
      %v693 = vpop.permute.xlu0 %692
      %vm694 = vcmp.lt.s32.totalorder %v493, 1
      %v695 = vsel %vm694, %v679, %v687
      %v696 = vsel %vm694, %v681, %v689
      %v697 = vsel %vm694, %v683, %v691
      %v698 = vsel %vm694, %v685, %v693
      %v699 = vsel %vm694, %v687, %v679
      %v700 = vsel %vm694, %v689, %v681
      %v701 = vsel %vm694, %v691, %v683
      %v702 = vsel %vm694, %v693, %v685
      %v703 = vsel %vm519, %v670, %v699
      %v704 = vsel %vm520, %v674, %v695
      %v705 = vsel %vm519, %v671, %v700
      %v706 = vsel %vm520, %v675, %v696
      %v707 = vsel %vm519, %v672, %v701
      %v708 = vsel %vm520, %v676, %v697
      %v709 = vsel %vm519, %v673, %v702
      %v710 = vsel %vm520, %v677, %v698
      %v711 = vadd.f32 %v581, %v703
      %v712 = vadd.f32 %v582, %v704
      %v713 = vadd.f32 %v583, %v705
      %v714 = vadd.f32 %v584, %v706
      %v715 = vadd.f32 %v585, %v707
      %v716 = vadd.f32 %v586, %v708
      %v717 = vadd.f32 %v587, %v709
      %v718 = vadd.f32 %v588, %v710
      %v719 = vld [vmem:[%s2] sm:$0xff]
      %v720 = vld [vmem:[%s2 + $0x8] sm:$0xff]
      %v721 = vld [vmem:[%s2 + $0x10] sm:$0xff]
      %v722 = vld [vmem:[%s2 + $0x18] sm:$0xff]
      %724 = vset.pattern.permute.xlu0 0
      %725 = vperm.xlu0 %724, %v719
      %v726 = vpop.permute.xlu0 %725
      %729 = vset.pattern.permute.xlu0 0
      %730 = vperm.xlu0 %729, %v720
      %v731 = vpop.permute.xlu0 %730
      %734 = vset.pattern.permute.xlu0 0
      %735 = vperm.xlu0 %734, %v721
      %v736 = vpop.permute.xlu0 %735
      %739 = vset.pattern.permute.xlu0 0
      %740 = vperm.xlu0 %739, %v722
      %v741 = vpop.permute.xlu0 %740
      %v743 = vadd.f32 %v711, %v726
      %v744 = vadd.f32 %v712, %v726
      %v745 = vadd.f32 %v713, %v731
      %v746 = vadd.f32 %v714, %v731
      %v747 = vadd.f32 %v715, %v736
      %v748 = vadd.f32 %v716, %v736
      %v749 = vadd.f32 %v717, %v741
      %v750 = vadd.f32 %v718, %v741
      %v751 = vmul.f32 %v743, %v747
      %v752 = vmul.f32 %v744, %v748
      %v753 = vmul.f32 %v745, %v749
      %v754 = vmul.f32 %v746, %v750
      %v755 = vld [vmem:[%s3] sm:$0xff]
      %v756 = vld [vmem:[%s4] sm:$0xff]
      %758 = vset.pattern.permute.xlu0 0
      %759 = vperm.xlu0 %758, %v756
      %v760 = vpop.permute.xlu0 %759
      %vm762 = vcmask 130048
      %v764 = vsel %vm762, %v755, 0
      %766 = vmatprep.subr.mxu0 %v752
      %767 = vmatpush1.msra.mxu0 %v751
      %768 = vmatprep.subr.mxu0 %v754
      %769 = vmatpush1.msra.mxu0 %v753
      %770 = vmatprep.subr.mxu0 0.0
      %771 = vmatpush1.msra.mxu0 0.0
      %772 = vmatprep.subr.mxu0 0.0
      %773 = vmatpush1.msra.mxu0 0.0
      %774 = vmatprep.subr.mxu0 0.0
      %775 = vmatpush1.msra.mxu0 0.0
      %776 = vmatprep.subr.mxu0 0.0
      %777 = vmatpush1.msra.mxu0 0.0
      %778 = vmatprep.subr.mxu0 0.0
      %779 = vmatpush1.msra.mxu0 0.0
      %780 = vmatprep.subr.mxu0 0.0
      %781 = vmatpush1.msra.mxu0 0.0
      %782 = vmatprep.subr.mxu0 0.0
      %783 = vmatpush1.msra.mxu0 0.0
      %784 = vmatprep.subr.mxu0 0.0
      %785 = vmatpush1.msra.mxu0 0.0
      %786 = vmatprep.subr.mxu0 0.0
      %787 = vmatpush1.msra.mxu0 0.0
      %788 = vmatprep.subr.mxu0 0.0
      %789 = vmatpush1.msra.mxu0 0.0
      %790 = vmatprep.subr.mxu0 0.0
      %791 = vmatpush1.msra.mxu0 0.0
      %792 = vmatprep.subr.mxu0 0.0
      %793 = vmatpush1.msra.mxu0 0.0
      %794 = vmatprep.subr.mxu0 0.0
      %795 = vmatpush1.msra.mxu0 0.0
      %796 = vmatprep.subr.mxu0 0.0
      %797 = vmatpush1.msra.mxu0 0.0
      %798 = vmatprep.subr.mxu0 0.0
      %799 = vmatpush1.msra.mxu0 0.0
      %800 = vmatprep.subr.mxu0 0.0
      %801 = vmatpush1.msra.mxu0 0.0
      %802 = vmatprep.subr.mxu0 0.0
      %803 = vmatpush1.msra.mxu0 0.0
      %804 = vmatprep.subr.mxu0 0.0
      %805 = vmatpush1.msra.mxu0 0.0
      %806 = vmatprep.subr.mxu0 0.0
      %807 = vmatpush1.msra.mxu0 0.0
      %808 = vmatprep.subr.mxu0 0.0
      %809 = vmatpush1.msra.mxu0 0.0
      %810 = vmatprep.subr.mxu0 0.0
      %811 = vmatpush1.msra.mxu0 0.0
      %812 = vmatprep.subr.mxu0 0.0
      %813 = vmatpush1.msra.mxu0 0.0
      %814 = vmatprep.subr.mxu0 0.0
      %815 = vmatpush1.msra.mxu0 0.0
      %816 = vmatprep.subr.mxu0 0.0
      %817 = vmatpush1.msra.mxu0 0.0
      %818 = vmatprep.subr.mxu0 0.0
      %819 = vmatpush1.msra.mxu0 0.0
      %820 = vmatprep.subr.mxu0 0.0
      %821 = vmatpush1.msra.mxu0 0.0
      %822 = vmatprep.subr.mxu0 0.0
      %823 = vmatpush1.msra.mxu0 0.0
      %824 = vmatprep.subr.mxu0 0.0
      %825 = vmatpush1.msra.mxu0 0.0
      %826 = vmatprep.subr.mxu0 0.0
      %827 = vmatpush1.msra.mxu0 0.0
      %828 = vmatprep.subr.mxu0 0.0
      %829 = vmatpush1.msra.mxu0 0.0
      %830 = vmatprep.mubr.f32.mxu0 0.0
      %831 = vmatmul.mubr.f32.gmra.mrb[0].mxu0 %v764
      %v832 = vpop.f32.mrb[0].mxu0
      %v833 = vadd.f32 %v760, %v832
      %v834 = vpop.f32.mrb[0].mxu0
      %v835 = vadd.f32 %v760, %v834
      %836 = vdwg.mxu0
      %837 = vst [vmem:[%s262] sm:$0xff] %v833
      %838 = vst [vmem:[%s262 + $0x8] sm:$0xff] %v835
      %s839 = smul.u32 2, %s21
      %p840 = scmp.lt.s32.totalorder %s20, 1
      %s841 = scalar_select %p840, %s20, 1
      %p842 = scmp.lt.s32.totalorder %s839, 1
      %s843 = scalar_select %p842, %s839, 1
      %s844 = smul.addr %s841, 2
      %s845 = sadd.s32 %s843, %s844
      %s846 = smul.addr %s845, 8
      %s847 = scalar_lea.vmem %s5, %s846
      // Predicated region
      $region41: #{wffn_naf_forward.1} parent=39 // pred_check
        %p848 = pneg %p160
      $region42: #{wffn_naf_forward.1} parent=39 // pred_check_branch
        %850 = sbr.rel (%p848) target = $region44
      $region43: #{wffn_naf_forward.1} parent=39 // pred_region
        %s851 = smul.u32 2, %s21
      $region44: #{wffn_naf_forward.1} parent=39 // pred_fallthru
        _
    $region40: #{wffn_naf_forward.1} parent=5 // pred_fallthru
      _
    %p852 = scmp.le.s32.totalorder 2, %s11
    // Predicated region
    $region45: #{wffn_naf_forward.1} parent=5 // pred_check
      %p853 = pneg %p852
    $region46: #{wffn_naf_forward.1} parent=5 // pred_check_branch
      %855 = sbr.rel (%p853) target = $region48
    $region47: #{wffn_naf_forward.1} parent=5 // pred_region
      %s856 = ssub.s32 %s11, 2
      // Predicated region
      $region49: #{wffn_naf_forward.1} parent=47 // pred_check
        %p857 = pneg %p166
      $region50: #{wffn_naf_forward.1} parent=47 // pred_check_branch
        %859 = sbr.rel (%p857) target = $region52
      $region51: #{wffn_naf_forward.1} parent=47 // pred_region
        %s860 = smul.u32 2, %s23
        %p861 = scmp.lt.s32.totalorder %s22, 1
        %s862 = scalar_select %p861, %s22, 1
        %p863 = scmp.lt.s32.totalorder %s860, 1
        %s864 = scalar_select %p863, %s860, 1
        %s865 = smul.addr %s862, 2
        %s866 = sadd.s32 %s864, %s865
        %s867 = smul.addr %s866, 8
        %s868 = scalar_lea.vmem %s5, %s867
      $region52: #{wffn_naf_forward.1} parent=47 // pred_fallthru
        _
    $region48: #{wffn_naf_forward.1} parent=5 // pred_fallthru
      _
  $region6: #{wffn_naf_forward.1} parent=0 // loop_footer
    %s15 = sadd.s32 1, %s11
  $region7: #{wffn_naf_forward.1} parent=0 // loop_footer_branch
    %10 = sbr.rel target = $region3
  $region8: #{wffn_naf_forward.1} parent=0 // loop_exit
    _

</llo_original>
